<compile_context>
chip_gen: v7x
topology: tpu7x:2x2x1
jax: 0.10.0
libtpu: 0.0.40
codegen_flags: <defaults>
</compile_context>

<pallas_src>
import functools
import math

import jax
import jax.numpy as jnp
import numpy as np
from jax.experimental import pallas as pl
from jax.experimental.pallas import tpu as pltpu


def _round_up(v, m):
    return ((v + m - 1) // m) * m


def _decoder_kernel(x_ref, h0_ref, wih_ref, bih_ref, whh_ref, bhhn_ref,
                    wout_ref, bout_ref,
                    hidden_ref, predict_ref, argmax_ref,
                    *, S, B, Bp, H, O):
    """ReLU -> GRU over S steps -> Linear -> LogSoftmax -> flattened argmax.

    Layouts (all float32):
      x_ref    : (S*Bp, E)   rows t*Bp .. t*Bp+Bp-1 are timestep t (Bp = batch padded to 8)
      h0_ref   : (Bp, H)
      wih_ref  : (E, G3)     gates packed [r | z | n] in columns 0:3H, G3 = 128-aligned
      bih_ref  : (1, G3)     b_ih with b_hh folded in for the r/z gates
      whh_ref  : (H, G3)     W_hh^T packed the same way
      bhhn_ref : (1, H)      hidden bias of the n gate (stays inside r * (...))
      wout_ref : (H, OP)     get_out weight^T, OP = 128-aligned output width
      bout_ref : (1, OP)
    """
    # ---- Hoisted input projection: one MXU pass over every timestep. ----------
    x_relu = jnp.maximum(x_ref[...], 0.0)                               # nn.ReLU()
    gi_all = jnp.dot(x_relu, wih_ref[...],
                     preferred_element_type=jnp.float32) + bih_ref[...]  # (S*Bp, G3)

    whh = whh_ref[...]                                                  # (H, G3), VMEM-resident
    bhh_n = bhhn_ref[...]                                               # (1, H)
    h = h0_ref[...]                                                     # (Bp, H)
    out0 = h                                                            # overwritten at t == 0

    # Static unroll (S is small): per step one (Bp,H)@(H,G3) matmul -> single MXU
    # output tile, then VPU/EUP gate math on (Bp, H)-wide slices.
    for t in range(S):
        gi = gi_all[t * Bp:(t + 1) * Bp, :]                             # sublane-tile aligned
        gh = jnp.dot(h, whh, preferred_element_type=jnp.float32)        # (Bp, G3)
        s = gi + gh
        r = jax.nn.sigmoid(s[:, 0:H])
        z = jax.nn.sigmoid(s[:, H:2 * H])
        n = jnp.tanh(gi[:, 2 * H:3 * H] + r * (gh[:, 2 * H:3 * H] + bhh_n))
        h = (1.0 - z) * n + z * h
        if t == 0:
            out0 = h                                                    # output_pred[0]

    hidden_ref[...] = h                                                 # (Bp, H); rows >= B are pad

    # get_out Linear on output_pred[0]; output lane-padded to OP (zero weight/bias cols).
    logits = jnp.dot(out0, wout_ref[...],
                     preferred_element_type=jnp.float32) + bout_ref[...]  # (Bp, OP)

    Bpn, OPn = logits.shape
    row = jax.lax.broadcasted_iota(jnp.int32, (Bpn, OPn), 0)
    col = jax.lax.broadcasted_iota(jnp.int32, (Bpn, OPn), 1)

    # LogSoftmax(dim=1) over the real O classes only: padded columns -> -inf (zero mass).
    logits_m = jnp.where(col < O, logits, -jnp.inf)
    m = jnp.max(logits_m, axis=1, keepdims=True)
    shifted = logits_m - m
    lse = jnp.log(jnp.sum(jnp.exp(shifted), axis=1, keepdims=True))
    logp = shifted - lse
    predict_ref[...] = logp                                             # lane-dense (Bp, OP) store

    # torch.argmax(softmax(logits)) flattens the (B, O) tensor; log is monotonic, so
    # the flattened argmax of log_softmax is identical. Lowest flat index wins on ties.
    valid = (row < B) & (col < O)
    flat_idx = (row * O + col).astype(jnp.float32)                      # exact: indices << 2^24
    cand = jnp.where(valid, logp, -jnp.inf)
    max_val = jnp.max(cand, keepdims=True)                              # (1, 1)
    masked_idx = jnp.where((cand == max_val) & valid, flat_idx, jnp.inf)
    argmax_ref[...] = jnp.min(masked_idx, keepdims=True).astype(jnp.int32)


def make_decoder_forward(params):
    """One-time weight preparation; returns a jitted forward(x, h0) -> (output, hidden, predict)."""
    f32 = np.float32
    w_ih = np.asarray(params["w_ih"], f32)     # (3H, E), gate order [r, z, n]
    w_hh = np.asarray(params["w_hh"], f32)     # (3H, H)
    b_ih = np.asarray(params["b_ih"], f32)     # (3H,)
    b_hh = np.asarray(params["b_hh"], f32)     # (3H,)
    w_out = np.asarray(params["w_out"], f32)   # (O, H)
    b_out = np.asarray(params["b_out"], f32)   # (O,)

    H = w_hh.shape[1]
    E = w_ih.shape[1]
    O = w_out.shape[0]
    G3 = max(128, _round_up(3 * H, 128))       # packed 3-gate lane width (96 -> 128 here)
    OP = max(128, _round_up(O, 128))           # lane-dense logits / predict width

    # Fold the r/z-gate hidden biases into the input-side bias (those gates only
    # ever see gi + gh); the n-gate hidden bias stays separate (inside r * (...)).
    b_comb = b_ih.copy()
    b_comb[:2 * H] += b_hh[:2 * H]

    wih_p = np.zeros((E, G3), f32); wih_p[:, :3 * H] = w_ih.T
    whh_p = np.zeros((H, G3), f32); whh_p[:, :3 * H] = w_hh.T
    bih_p = np.zeros((1, G3), f32); bih_p[0, :3 * H] = b_comb
    bhhn_p = b_hh[2 * H:].reshape(1, H).astype(f32).copy()
    wout_p = np.zeros((H, OP), f32); wout_p[:, :O] = w_out.T
    bout_p = np.zeros((1, OP), f32); bout_p[0, :O] = b_out

    wih_c, bih_c, whh_c, bhhn_c, wout_c, bout_c = (
        jnp.asarray(a) for a in (wih_p, bih_p, whh_p, bhhn_p, wout_p, bout_p))

    vmem = pl.BlockSpec(memory_space=pltpu.MemorySpace.VMEM)

    @jax.jit
    def forward(x, h0):
        S, B, _ = x.shape
        Bp = max(8, _round_up(B, 8))           # sublane-tile aligned batch

        x32 = x.astype(jnp.float32)
        xp = jnp.zeros((S, Bp, E), jnp.float32).at[:, :B, :].set(x32)
        x_flat = xp.reshape(S * Bp, E)
        h0p = jnp.zeros((Bp, H), jnp.float32).at[:B, :].set(h0[0].astype(jnp.float32))

        # If this decoder is ever run over many independent sequences (big B), add a
        # grid over batch with dimension_semantics=("parallel",) to use both v7x TCs.
        hidden_pad, predict_pad, argmax_flat = pl.pallas_call(
            functools.partial(_decoder_kernel, S=S, B=B, Bp=Bp, H=H, O=O),
            out_shape=(
                jax.ShapeDtypeStruct((Bp, H), jnp.float32),   # final GRU hidden (padded rows)
                jax.ShapeDtypeStruct((Bp, OP), jnp.float32),  # log_softmax(logits), lane-dense
                jax.ShapeDtypeStruct((1, 1), jnp.int32),      # flattened argmax
            ),
            in_specs=[vmem] * 8,
            out_specs=(vmem, vmem, vmem),
        )(x_flat, h0p, wih_c, bih_c, whh_c, bhhn_c, wout_c, bout_c)

        # TODO(synk): torch returns an int64 (torch.long) scalar; JAX side uses int32.
        output = argmax_flat[0, 0]
        hidden = hidden_pad[:B][None, ...]      # (1, B, H)
        predict = predict_pad[:B, :O]           # (B, O)
        return output, hidden, predict

    return forward


def _reference_forward(x, h0, params):
    """Pure-JAX mirror of the PyTorch module (HIGHEST-precision matmuls for a tight check)."""
    S, B, E = x.shape
    H = h0.shape[-1]
    P = jax.lax.Precision.HIGHEST
    xr = jnp.maximum(x, 0.0)
    h = h0[0]
    out0 = None
    for t in range(S):
        gi = jnp.dot(xr[t], params["w_ih"].T, precision=P) + params["b_ih"]
        gh = jnp.dot(h, params["w_hh"].T, precision=P) + params["b_hh"]
        r = jax.nn.sigmoid(gi[:, :H] + gh[:, :H])
        z = jax.nn.sigmoid(gi[:, H:2 * H] + gh[:, H:2 * H])
        n = jnp.tanh(gi[:, 2 * H:] + r * gh[:, 2 * H:])
        h = (1.0 - z) * n + z * h
        if t == 0:
            out0 = h
    logits = jnp.dot(out0, params["w_out"].T, precision=P) + params["b_out"]
    predict = jax.nn.log_softmax(logits, axis=1)
    output = jnp.argmax(jax.nn.softmax(logits, axis=1))
    return output, h[None], predict


if __name__ == "__main__":
    # Small shapes implied by the module: seq=4, batch=2, input_embed=16, hidden=32, output=20.
    S, B, E, H, O = 4, 2, 16, 32, 20

    key = jax.random.PRNGKey(0)
    ks = jax.random.split(key, 8)
    bound = 1.0 / math.sqrt(H)   # PyTorch default init bound for GRU / Linear(hidden -> *)

    params = dict(
        w_ih=jax.random.uniform(ks[0], (3 * H, E), jnp.float32, -bound, bound),
        w_hh=jax.random.uniform(ks[1], (3 * H, H), jnp.float32, -bound, bound),
        b_ih=jax.random.uniform(ks[2], (3 * H,), jnp.float32, -bound, bound),
        b_hh=jax.random.uniform(ks[3], (3 * H,), jnp.float32, -bound, bound),
        w_out=jax.random.uniform(ks[4], (O, H), jnp.float32, -bound, bound),
        b_out=jax.random.uniform(ks[5], (O,), jnp.float32, -bound, bound),
    )

    x = jax.random.normal(ks[6], (S, B, E), jnp.float32)
    h0 = jax.random.normal(ks[7], (1, B, H), jnp.float32)

    decoder_forward = make_decoder_forward(params)          # one-time weight prep + jit
    output, hidden, predict = decoder_forward(x, h0)
    jax.block_until_ready((output, hidden, predict))

    assert output.shape == ()
    assert hidden.shape == (1, B, H)
    assert predict.shape == (B, O)

    # Self-consistency: in-kernel flat argmax must match argmax of the kernel's own
    # log-softmax output (log is monotone in softmax).
    assert int(output) == int(jnp.argmax(predict))
    assert 0 <= int(output) < B * O

    # Tight check against the pure-JAX reference (both sides are f32-accurate matmuls).
    output_ref, hidden_ref, predict_ref = _reference_forward(x, h0, params)
    np.testing.assert_allclose(np.asarray(hidden), np.asarray(hidden_ref),
                               atol=2e-4, rtol=2e-4)
    np.testing.assert_allclose(np.asarray(predict), np.asarray(predict_ref),
                               atol=2e-4, rtol=2e-4)
    assert int(output) == int(output_ref)

    print("KERNEL_OK")
</pallas_src>

<mosaic_0001>
module attributes {stable_mosaic.version = 11 : i64} {
  func.func @_decoder_kernel(%arg0: memref<32x16xf32, #tpu.memory_space<vmem>>, %arg1: memref<8x32xf32, #tpu.memory_space<vmem>>, %arg2: memref<16x128xf32, #tpu.memory_space<vmem>>, %arg3: memref<1x128xf32, #tpu.memory_space<vmem>>, %arg4: memref<32x128xf32, #tpu.memory_space<vmem>>, %arg5: memref<1x32xf32, #tpu.memory_space<vmem>>, %arg6: memref<32x128xf32, #tpu.memory_space<vmem>>, %arg7: memref<1x128xf32, #tpu.memory_space<vmem>>, %arg8: memref<8x32xf32, #tpu.memory_space<vmem>>, %arg9: memref<8x128xf32, #tpu.memory_space<vmem>>, %arg10: memref<1x1xi32, #tpu.memory_space<vmem>>) attributes {dimension_semantics = [], scalar_prefetch = 0 : i64, scratch_operands = 0 : i64, tpu.core_type = #tpu.core_type<tc>} {
    %c0 = arith.constant 0 : index
    %c0_0 = arith.constant 0 : index
    %0 = vector.load %arg0[%c0, %c0_0] : memref<32x16xf32, #tpu.memory_space<vmem>>, vector<32x16xf32>
    %cst = arith.constant 0.000000e+00 : f32
    %1 = vector.broadcast %cst : f32 to vector<32x16xf32>
    %2 = arith.maximumf %0, %1 : vector<32x16xf32>
    %c0_1 = arith.constant 0 : index
    %c0_2 = arith.constant 0 : index
    %3 = vector.load %arg2[%c0_1, %c0_2] : memref<16x128xf32, #tpu.memory_space<vmem>>, vector<16x128xf32>
    %cst_3 = arith.constant dense<0.000000e+00> : vector<32x128xf32>
    %4 = tpu.matmul %2, %3, %cst_3 {dimension_numbers = #tpu.dot_dimension_numbers<[1], [0], [0], [1], [0, 0, 1, 1], [], []>} : vector<32x16xf32>, vector<16x128xf32>, vector<32x128xf32> -> vector<32x128xf32>
    %c0_4 = arith.constant 0 : index
    %c0_5 = arith.constant 0 : index
    %5 = vector.load %arg3[%c0_4, %c0_5] : memref<1x128xf32, #tpu.memory_space<vmem>>, vector<1x128xf32>
    %6 = vector.broadcast %5 : vector<1x128xf32> to vector<32x128xf32>
    %7 = arith.addf %4, %6 : vector<32x128xf32>
    %c0_6 = arith.constant 0 : index
    %c0_7 = arith.constant 0 : index
    %8 = vector.load %arg4[%c0_6, %c0_7] : memref<32x128xf32, #tpu.memory_space<vmem>>, vector<32x128xf32>
    %c0_8 = arith.constant 0 : index
    %c0_9 = arith.constant 0 : index
    %9 = vector.load %arg5[%c0_8, %c0_9] : memref<1x32xf32, #tpu.memory_space<vmem>>, vector<1x32xf32>
    %c0_10 = arith.constant 0 : index
    %c0_11 = arith.constant 0 : index
    %10 = vector.load %arg1[%c0_10, %c0_11] : memref<8x32xf32, #tpu.memory_space<vmem>>, vector<8x32xf32>
    %11 = vector.extract_strided_slice %7 {offsets = [0, 0], sizes = [8, 128], strides = [1, 1]} : vector<32x128xf32> to vector<8x128xf32>
    %cst_12 = arith.constant dense<0.000000e+00> : vector<8x128xf32>
    %12 = tpu.matmul %10, %8, %cst_12 {dimension_numbers = #tpu.dot_dimension_numbers<[1], [0], [0], [1], [0, 0, 1, 1], [], []>} : vector<8x32xf32>, vector<32x128xf32>, vector<8x128xf32> -> vector<8x128xf32>
    %13 = arith.addf %11, %12 : vector<8x128xf32>
    %14 = vector.extract_strided_slice %13 {offsets = [0, 0], sizes = [8, 32], strides = [1, 1]} : vector<8x128xf32> to vector<8x32xf32>
    %15 = arith.negf %14 : vector<8x32xf32>
    %16 = math.exp %15 : vector<8x32xf32>
    %cst_13 = arith.constant 1.000000e+00 : f32
    %17 = vector.broadcast %cst_13 : f32 to vector<8x32xf32>
    %18 = arith.addf %17, %16 : vector<8x32xf32>
    %19 = arith.divf %17, %18 : vector<8x32xf32>
    %20 = vector.extract_strided_slice %13 {offsets = [0, 32], sizes = [8, 32], strides = [1, 1]} : vector<8x128xf32> to vector<8x32xf32>
    %21 = arith.negf %20 : vector<8x32xf32>
    %22 = math.exp %21 : vector<8x32xf32>
    %cst_14 = arith.constant 1.000000e+00 : f32
    %23 = vector.broadcast %cst_14 : f32 to vector<8x32xf32>
    %24 = arith.addf %23, %22 : vector<8x32xf32>
    %25 = arith.divf %23, %24 : vector<8x32xf32>
    %26 = vector.extract_strided_slice %11 {offsets = [0, 64], sizes = [8, 32], strides = [1, 1]} : vector<8x128xf32> to vector<8x32xf32>
    %27 = vector.extract_strided_slice %12 {offsets = [0, 64], sizes = [8, 32], strides = [1, 1]} : vector<8x128xf32> to vector<8x32xf32>
    %28 = vector.broadcast %9 : vector<1x32xf32> to vector<8x32xf32>
    %29 = arith.addf %27, %28 : vector<8x32xf32>
    %30 = arith.mulf %19, %29 : vector<8x32xf32>
    %31 = arith.addf %26, %30 : vector<8x32xf32>
    %32 = math.tanh %31 : vector<8x32xf32>
    %cst_15 = arith.constant 1.000000e+00 : f32
    %33 = vector.broadcast %cst_15 : f32 to vector<8x32xf32>
    %34 = arith.subf %33, %25 : vector<8x32xf32>
    %35 = arith.mulf %34, %32 : vector<8x32xf32>
    %36 = arith.mulf %25, %10 : vector<8x32xf32>
    %37 = arith.addf %35, %36 : vector<8x32xf32>
    %38 = vector.extract_strided_slice %7 {offsets = [8, 0], sizes = [8, 128], strides = [1, 1]} : vector<32x128xf32> to vector<8x128xf32>
    %cst_16 = arith.constant dense<0.000000e+00> : vector<8x128xf32>
    %39 = tpu.matmul %37, %8, %cst_16 {dimension_numbers = #tpu.dot_dimension_numbers<[1], [0], [0], [1], [0, 0, 1, 1], [], []>} : vector<8x32xf32>, vector<32x128xf32>, vector<8x128xf32> -> vector<8x128xf32>
    %40 = arith.addf %38, %39 : vector<8x128xf32>
    %41 = vector.extract_strided_slice %40 {offsets = [0, 0], sizes = [8, 32], strides = [1, 1]} : vector<8x128xf32> to vector<8x32xf32>
    %42 = arith.negf %41 : vector<8x32xf32>
    %43 = math.exp %42 : vector<8x32xf32>
    %cst_17 = arith.constant 1.000000e+00 : f32
    %44 = vector.broadcast %cst_17 : f32 to vector<8x32xf32>
    %45 = arith.addf %44, %43 : vector<8x32xf32>
    %46 = arith.divf %44, %45 : vector<8x32xf32>
    %47 = vector.extract_strided_slice %40 {offsets = [0, 32], sizes = [8, 32], strides = [1, 1]} : vector<8x128xf32> to vector<8x32xf32>
    %48 = arith.negf %47 : vector<8x32xf32>
    %49 = math.exp %48 : vector<8x32xf32>
    %cst_18 = arith.constant 1.000000e+00 : f32
    %50 = vector.broadcast %cst_18 : f32 to vector<8x32xf32>
    %51 = arith.addf %50, %49 : vector<8x32xf32>
    %52 = arith.divf %50, %51 : vector<8x32xf32>
    %53 = vector.extract_strided_slice %38 {offsets = [0, 64], sizes = [8, 32], strides = [1, 1]} : vector<8x128xf32> to vector<8x32xf32>
    %54 = vector.extract_strided_slice %39 {offsets = [0, 64], sizes = [8, 32], strides = [1, 1]} : vector<8x128xf32> to vector<8x32xf32>
    %55 = vector.broadcast %9 : vector<1x32xf32> to vector<8x32xf32>
    %56 = arith.addf %54, %55 : vector<8x32xf32>
    %57 = arith.mulf %46, %56 : vector<8x32xf32>
    %58 = arith.addf %53, %57 : vector<8x32xf32>
    %59 = math.tanh %58 : vector<8x32xf32>
    %cst_19 = arith.constant 1.000000e+00 : f32
    %60 = vector.broadcast %cst_19 : f32 to vector<8x32xf32>
    %61 = arith.subf %60, %52 : vector<8x32xf32>
    %62 = arith.mulf %61, %59 : vector<8x32xf32>
    %63 = arith.mulf %52, %37 : vector<8x32xf32>
    %64 = arith.addf %62, %63 : vector<8x32xf32>
    %65 = vector.extract_strided_slice %7 {offsets = [16, 0], sizes = [8, 128], strides = [1, 1]} : vector<32x128xf32> to vector<8x128xf32>
    %cst_20 = arith.constant dense<0.000000e+00> : vector<8x128xf32>
    %66 = tpu.matmul %64, %8, %cst_20 {dimension_numbers = #tpu.dot_dimension_numbers<[1], [0], [0], [1], [0, 0, 1, 1], [], []>} : vector<8x32xf32>, vector<32x128xf32>, vector<8x128xf32> -> vector<8x128xf32>
    %67 = arith.addf %65, %66 : vector<8x128xf32>
    %68 = vector.extract_strided_slice %67 {offsets = [0, 0], sizes = [8, 32], strides = [1, 1]} : vector<8x128xf32> to vector<8x32xf32>
    %69 = arith.negf %68 : vector<8x32xf32>
    %70 = math.exp %69 : vector<8x32xf32>
    %cst_21 = arith.constant 1.000000e+00 : f32
    %71 = vector.broadcast %cst_21 : f32 to vector<8x32xf32>
    %72 = arith.addf %71, %70 : vector<8x32xf32>
    %73 = arith.divf %71, %72 : vector<8x32xf32>
    %74 = vector.extract_strided_slice %67 {offsets = [0, 32], sizes = [8, 32], strides = [1, 1]} : vector<8x128xf32> to vector<8x32xf32>
    %75 = arith.negf %74 : vector<8x32xf32>
    %76 = math.exp %75 : vector<8x32xf32>
    %cst_22 = arith.constant 1.000000e+00 : f32
    %77 = vector.broadcast %cst_22 : f32 to vector<8x32xf32>
    %78 = arith.addf %77, %76 : vector<8x32xf32>
    %79 = arith.divf %77, %78 : vector<8x32xf32>
    %80 = vector.extract_strided_slice %65 {offsets = [0, 64], sizes = [8, 32], strides = [1, 1]} : vector<8x128xf32> to vector<8x32xf32>
    %81 = vector.extract_strided_slice %66 {offsets = [0, 64], sizes = [8, 32], strides = [1, 1]} : vector<8x128xf32> to vector<8x32xf32>
    %82 = vector.broadcast %9 : vector<1x32xf32> to vector<8x32xf32>
    %83 = arith.addf %81, %82 : vector<8x32xf32>
    %84 = arith.mulf %73, %83 : vector<8x32xf32>
    %85 = arith.addf %80, %84 : vector<8x32xf32>
    %86 = math.tanh %85 : vector<8x32xf32>
    %cst_23 = arith.constant 1.000000e+00 : f32
    %87 = vector.broadcast %cst_23 : f32 to vector<8x32xf32>
    %88 = arith.subf %87, %79 : vector<8x32xf32>
    %89 = arith.mulf %88, %86 : vector<8x32xf32>
    %90 = arith.mulf %79, %64 : vector<8x32xf32>
    %91 = arith.addf %89, %90 : vector<8x32xf32>
    %92 = vector.extract_strided_slice %7 {offsets = [24, 0], sizes = [8, 128], strides = [1, 1]} : vector<32x128xf32> to vector<8x128xf32>
    %cst_24 = arith.constant dense<0.000000e+00> : vector<8x128xf32>
    %93 = tpu.matmul %91, %8, %cst_24 {dimension_numbers = #tpu.dot_dimension_numbers<[1], [0], [0], [1], [0, 0, 1, 1], [], []>} : vector<8x32xf32>, vector<32x128xf32>, vector<8x128xf32> -> vector<8x128xf32>
    %94 = arith.addf %92, %93 : vector<8x128xf32>
    %95 = vector.extract_strided_slice %94 {offsets = [0, 0], sizes = [8, 32], strides = [1, 1]} : vector<8x128xf32> to vector<8x32xf32>
    %96 = arith.negf %95 : vector<8x32xf32>
    %97 = math.exp %96 : vector<8x32xf32>
    %cst_25 = arith.constant 1.000000e+00 : f32
    %98 = vector.broadcast %cst_25 : f32 to vector<8x32xf32>
    %99 = arith.addf %98, %97 : vector<8x32xf32>
    %100 = arith.divf %98, %99 : vector<8x32xf32>
    %101 = vector.extract_strided_slice %94 {offsets = [0, 32], sizes = [8, 32], strides = [1, 1]} : vector<8x128xf32> to vector<8x32xf32>
    %102 = arith.negf %101 : vector<8x32xf32>
    %103 = math.exp %102 : vector<8x32xf32>
    %cst_26 = arith.constant 1.000000e+00 : f32
    %104 = vector.broadcast %cst_26 : f32 to vector<8x32xf32>
    %105 = arith.addf %104, %103 : vector<8x32xf32>
    %106 = arith.divf %104, %105 : vector<8x32xf32>
    %107 = vector.extract_strided_slice %92 {offsets = [0, 64], sizes = [8, 32], strides = [1, 1]} : vector<8x128xf32> to vector<8x32xf32>
    %108 = vector.extract_strided_slice %93 {offsets = [0, 64], sizes = [8, 32], strides = [1, 1]} : vector<8x128xf32> to vector<8x32xf32>
    %109 = vector.broadcast %9 : vector<1x32xf32> to vector<8x32xf32>
    %110 = arith.addf %108, %109 : vector<8x32xf32>
    %111 = arith.mulf %100, %110 : vector<8x32xf32>
    %112 = arith.addf %107, %111 : vector<8x32xf32>
    %113 = math.tanh %112 : vector<8x32xf32>
    %cst_27 = arith.constant 1.000000e+00 : f32
    %114 = vector.broadcast %cst_27 : f32 to vector<8x32xf32>
    %115 = arith.subf %114, %106 : vector<8x32xf32>
    %116 = arith.mulf %115, %113 : vector<8x32xf32>
    %117 = arith.mulf %106, %91 : vector<8x32xf32>
    %118 = arith.addf %116, %117 : vector<8x32xf32>
    %c0_28 = arith.constant 0 : index
    %c0_29 = arith.constant 0 : index
    %119 = vector.load %arg8[%c0_28, %c0_29] : memref<8x32xf32, #tpu.memory_space<vmem>>, vector<8x32xf32>
    tpu.vector_store %arg8[%c0_28, %c0_29], %118 {strides = array<i32>} : memref<8x32xf32, #tpu.memory_space<vmem>>, vector<8x32xf32>,
    %c0_30 = arith.constant 0 : index
    %c0_31 = arith.constant 0 : index
    %120 = vector.load %arg6[%c0_30, %c0_31] : memref<32x128xf32, #tpu.memory_space<vmem>>, vector<32x128xf32>
    %cst_32 = arith.constant dense<0.000000e+00> : vector<8x128xf32>
    %121 = tpu.matmul %37, %120, %cst_32 {dimension_numbers = #tpu.dot_dimension_numbers<[1], [0], [0], [1], [0, 0, 1, 1], [], []>} : vector<8x32xf32>, vector<32x128xf32>, vector<8x128xf32> -> vector<8x128xf32>
    %c0_33 = arith.constant 0 : index
    %c0_34 = arith.constant 0 : index
    %122 = vector.load %arg7[%c0_33, %c0_34] : memref<1x128xf32, #tpu.memory_space<vmem>>, vector<1x128xf32>
    %123 = vector.broadcast %122 : vector<1x128xf32> to vector<8x128xf32>
    %124 = arith.addf %121, %123 : vector<8x128xf32>
    %125 = tpu.iota {dimensions = array<i32: 0>} : vector<8x128xi32>
    %126 = tpu.iota {dimensions = array<i32: 1>} : vector<8x128xi32>
    %c20_i32 = arith.constant 20 : i32
    %127 = vector.broadcast %c20_i32 : i32 to vector<8x128xi32>
    %128 = arith.cmpi slt, %126, %127 : vector<8x128xi32>
    %cst_35 = arith.constant 0xFF800000 : f32
    %129 = vector.broadcast %cst_35 : f32 to vector<8x128xf32>
    %130 = arith.select %128, %124, %129 : vector<8x128xi1>, vector<8x128xf32>
    %cst_36 = arith.constant dense<0xFF800000> : vector<8xf32>
    %131 = vector.multi_reduction <maximumf>, %130, %cst_36 [1] : vector<8x128xf32> to vector<8xf32>
    %132 = vector.shape_cast %131 : vector<8xf32> to vector<8x1xf32>
    %133 = vector.broadcast %132 : vector<8x1xf32> to vector<8x128xf32>
    %134 = arith.subf %130, %133 : vector<8x128xf32>
    %135 = math.exp %134 : vector<8x128xf32>
    %cst_37 = arith.constant dense<0.000000e+00> : vector<8xf32>
    %136 = vector.multi_reduction <add>, %135, %cst_37 [1] : vector<8x128xf32> to vector<8xf32>
    %137 = vector.shape_cast %136 : vector<8xf32> to vector<8x1xf32>
    %138 = math.log %137 : vector<8x1xf32>
    %139 = vector.broadcast %138 : vector<8x1xf32> to vector<8x128xf32>
    %140 = arith.subf %134, %139 : vector<8x128xf32>
    %c0_38 = arith.constant 0 : index
    %c0_39 = arith.constant 0 : index
    %141 = vector.load %arg9[%c0_38, %c0_39] : memref<8x128xf32, #tpu.memory_space<vmem>>, vector<8x128xf32>
    tpu.vector_store %arg9[%c0_38, %c0_39], %140 {strides = array<i32>} : memref<8x128xf32, #tpu.memory_space<vmem>>, vector<8x128xf32>,
    %c2_i32 = arith.constant 2 : i32
    %142 = vector.broadcast %c2_i32 : i32 to vector<8x128xi32>
    %143 = arith.cmpi slt, %125, %142 : vector<8x128xi32>
    %c20_i32_40 = arith.constant 20 : i32
    %144 = vector.broadcast %c20_i32_40 : i32 to vector<8x128xi32>
    %145 = arith.cmpi slt, %126, %144 : vector<8x128xi32>
    %146 = arith.andi %143, %145 : vector<8x128xi1>
    %c20_i32_41 = arith.constant 20 : i32
    %147 = vector.broadcast %c20_i32_41 : i32 to vector<8x128xi32>
    %148 = arith.muli %125, %147 : vector<8x128xi32>
    %149 = arith.addi %148, %126 : vector<8x128xi32>
    %150 = arith.sitofp %149 : vector<8x128xi32> to vector<8x128xf32>
    %cst_42 = arith.constant 0xFF800000 : f32
    %151 = vector.broadcast %cst_42 : f32 to vector<8x128xf32>
    %152 = arith.select %146, %140, %151 : vector<8x128xi1>, vector<8x128xf32>
    %153 = vector.shape_cast %152 : vector<8x128xf32> to vector<1x8x128xf32>
    %cst_43 = arith.constant dense<0xFF800000> : vector<1xf32>
    %154 = vector.multi_reduction <maximumf>, %153, %cst_43 [1, 2] : vector<1x8x128xf32> to vector<1xf32>
    %155 = vector.shape_cast %154 : vector<1xf32> to vector<1x1x1xf32>
    %156 = vector.extract %155[0, 0, 0] : f32 from vector<1x1x1xf32>
    %157 = vector.broadcast %156 : f32 to vector<1x1xf32>
    %158 = vector.broadcast %157 : vector<1x1xf32> to vector<8x128xf32>
    %159 = arith.cmpf oeq, %152, %158 : vector<8x128xf32>
    %160 = arith.andi %159, %146 : vector<8x128xi1>
    %cst_44 = arith.constant 0x7F800000 : f32
    %161 = vector.broadcast %cst_44 : f32 to vector<8x128xf32>
    %162 = arith.select %160, %150, %161 : vector<8x128xi1>, vector<8x128xf32>
    %163 = vector.shape_cast %162 : vector<8x128xf32> to vector<1x8x128xf32>
    %cst_45 = arith.constant dense<0x7F800000> : vector<1xf32>
    %164 = vector.multi_reduction <minimumf>, %163, %cst_45 [1, 2] : vector<1x8x128xf32> to vector<1xf32>
    %165 = vector.shape_cast %164 : vector<1xf32> to vector<1x1x1xf32>
    %166 = vector.extract %165[0, 0, 0] : f32 from vector<1x1x1xf32>
    %167 = vector.broadcast %166 : f32 to vector<1x1xf32>
    %168 = arith.fptosi %167 : vector<1x1xf32> to vector<1x1xi32>
    %c0_46 = arith.constant 0 : index
    %c0_47 = arith.constant 0 : index
    %169 = vector.load %arg10[%c0_46, %c0_47] : memref<1x1xi32, #tpu.memory_space<vmem>>, vector<1x1xi32>
    tpu.vector_store %arg10[%c0_46, %c0_47], %168 {strides = array<i32>} : memref<1x1xi32, #tpu.memory_space<vmem>>, vector<1x1xi32>,
    return
  }
}

</mosaic_0001>

<llo_original>
// kernel: forward.1
$region0: #{forward.1}
  #allocation0 [shape = 'u32[]', space=smem, size = 0x4, offset = 0x4, fixed_abs, tag = 'smem constant byte address 0x4 - core index']
  #allocation1 [shape = 'u32[144,128]{1,0:T(1,128)}', space=vmem, size = 0x12000, scoped, tag = 'internal scratch']
  %s0 = inlined_call_operand.vmem [shape: f32[32,16], index: 0, kind: input, shape index: {}]
  %s1 = inlined_call_operand.vmem [shape: f32[8,32], index: 1, kind: input, shape index: {}]
  %s2 = inlined_call_operand.hbm [shape: f32[16,128], index: 2, kind: input, shape index: {}]
  %s3 = inlined_call_operand.hbm [shape: f32[1,128], index: 3, kind: input, shape index: {}]
  %s4 = inlined_call_operand.vmem [shape: f32[32,128], index: 4, kind: input, shape index: {}]
  %s5 = inlined_call_operand.vmem [shape: f32[1,32], index: 5, kind: input, shape index: {}]
  %s6 = inlined_call_operand.vmem [shape: f32[32,128], index: 6, kind: input, shape index: {}]
  %s7 = inlined_call_operand.vmem [shape: f32[1,128], index: 7, kind: input, shape index: {}]
  %s8 = inlined_call_operand.vmem [shape: f32[8,32], index: 8, kind: output, shape index: {0}]
  %s9 = inlined_call_operand.vmem [shape: f32[8,128], index: 9, kind: output, shape index: {1}]
  %s10 = inlined_call_operand.hbm [shape: s32[1,1], index: 10, kind: output, shape index: {2}]
  %11 = xla_tuple %s8, %s9, %s10
  %s12 = sld [smem:[#allocation0]]
  $region66: #{forward.1} parent=0
    _
  %s14 = ssub.s32 1, %s12
  %s15 = scalar_select 0, %s14, %s12
  $region1: #{forward.1} parent=0
    #allocation2 [shape = 'u8[8192]{0}', space=vmem, size = 0x2000, scoped, tag = 'input window, operand 2, single buffered']
    #allocation3 [shape = 's32[1]{0}', space=sflag, size = 0x4, scoped, tag = 'scoped memory for forward.1']
    #allocation4 [shape = 's32[1]{0}', space=sflag, size = 0x4, scoped, tag = 'scoped memory for forward.1']
    #allocation5 [shape = 'u8[512]{0}', space=vmem, size = 0x400, scoped, tag = 'input window, operand 3, single buffered']
    #allocation6 [shape = 's32[1]{0}', space=sflag, size = 0x4, scoped, tag = 'scoped memory for forward.1']
    #allocation7 [shape = 'u8[512]{0}', space=vmem, size = 0x400, scoped, tag = 'output window, operand 2, single buffered']
    %16 = vsyncpa [#allocation3], 0
    %17 = vsyncpa [#allocation6], 0
    %18 = vsyncpa [#allocation4], 0
    // Predicated region
    $region2: #{forward.1} parent=1 // pred_check
      _
    $region3: #{forward.1} parent=1 // pred_check_branch
      %20 = sbr.rel (0) target = $region5
    $region4: #{forward.1} parent=1 // pred_region
      _
    $region5: #{forward.1} parent=1 // pred_fallthru
      _
    // Predicated region
    $region6: #{forward.1} parent=1 // pred_check
      _
    $region7: #{forward.1} parent=1 // pred_check_branch
      %22 = sbr.rel (0) target = $region9
    $region8: #{forward.1} parent=1 // pred_region
      _
    $region9: #{forward.1} parent=1 // pred_fallthru
      _
    // Predicated region
    $region10: #{forward.1} parent=1 // pred_check
      _
    $region11: #{forward.1} parent=1 // pred_check_branch
      %24 = sbr.rel (0) target = $region13
    $region12: #{forward.1} parent=1 // pred_region
      %s26 = ssub.s32 256, 256
      %27 = vsyncadd [#allocation3], %s26
      %s28 = sshll.u32 [#allocation2], 4
      %s29 = int_to_ptr.vmem [resolvable:$true] %s28
      %34 = dma.hbm_to_vmem [thread:$0]  %s2, 256, %s29, [#allocation3], 128, 128, 8
    $region13: #{forward.1} parent=1 // pred_fallthru
      _
    // Predicated region
    $region14: #{forward.1} parent=1 // pred_check
      _
    $region15: #{forward.1} parent=1 // pred_check_branch
      %36 = sbr.rel (0) target = $region17
    $region16: #{forward.1} parent=1 // pred_region
      %s38 = ssub.s32 16, 16
      %39 = vsyncadd [#allocation6], %s38
      %s41 = sshll.u32 [#allocation5], 4
      %s42 = int_to_ptr.vmem [resolvable:$true] %s41
      %44 = dma.hbm_to_vmem [thread:$0]  %s3, 16, %s42, [#allocation6]
    $region17: #{forward.1} parent=1 // pred_fallthru
      _
    // Predicated region
    $region18: #{forward.1} parent=1 // pred_check
      _
    $region19: #{forward.1} parent=1 // pred_check_branch
      %46 = sbr.rel (0) target = $region21
    $region20: #{forward.1} parent=1 // pred_region
      _
    $region21: #{forward.1} parent=1 // pred_fallthru
      _
    // Predicated region
    $region22: #{forward.1} parent=1 // pred_check
      _
    $region23: #{forward.1} parent=1 // pred_check_branch
      %48 = sbr.rel (0) target = $region25
    $region24: #{forward.1} parent=1 // pred_region
      _
    $region25: #{forward.1} parent=1 // pred_fallthru
      _
    // Predicated region
    $region26: #{forward.1} parent=1 // pred_check
      _
    $region27: #{forward.1} parent=1 // pred_check_branch
      %50 = sbr.rel (0) target = $region29
    $region28: #{forward.1} parent=1 // pred_region
      _
    $region29: #{forward.1} parent=1 // pred_fallthru
      _
    // Predicated region
    $region30: #{forward.1} parent=1 // pred_check
      _
    $region31: #{forward.1} parent=1 // pred_check_branch
      %52 = sbr.rel (0) target = $region33
    $region32: #{forward.1} parent=1 // pred_region
      _
    $region33: #{forward.1} parent=1 // pred_fallthru
      _
    // Predicated region
    $region34: #{forward.1} parent=1 // pred_check
      _
    $region35: #{forward.1} parent=1 // pred_check_branch
      %54 = sbr.rel (0) target = $region37
    $region36: #{forward.1} parent=1 // pred_region
      %55 = dma.done [#allocation3], 256
    $region37: #{forward.1} parent=1 // pred_fallthru
      _
    // Predicated region
    $region38: #{forward.1} parent=1 // pred_check
      _
    $region39: #{forward.1} parent=1 // pred_check_branch
      %57 = sbr.rel (0) target = $region41
    $region40: #{forward.1} parent=1 // pred_region
      %58 = dma.done [#allocation6], 16
    $region41: #{forward.1} parent=1 // pred_fallthru
      _
    %v59 = vld [vmem:[%s0] sm:$0xff]
    %v60 = vld [vmem:[%s0 + $0x8] sm:$0xff]
    %v61 = vld [vmem:[%s0 + $0x10] sm:$0xff]
    %v62 = vld [vmem:[%s0 + $0x18] sm:$0xff]
    %v63 = vmax.f32 %v59, 0.0
    %v64 = vmax.f32 %v60, 0.0
    %v65 = vmax.f32 %v61, 0.0
    %v66 = vmax.f32 %v62, 0.0
    %v67 = vld [vmem:[#allocation2] sm:$0xff]
    %v68 = vld [vmem:[#allocation2 + $0x8] sm:$0xff]
    %v69 = vld [vmem:[#allocation5] sm:$0x1]
    %v71 = vlaneseq
    %v72 = vshrl.u32 %v71, 7
    %v73 = vsub.s32 0, %v72
    %v74 = vrot.slane %v69, %v73
    %vm76 = vcmask 130048
    %v78 = vsel %vm76, %v63, 0
    %v81 = vsel %vm76, %v64, 0
    %v84 = vsel %vm76, %v65, 0
    %v87 = vsel %vm76, %v66, 0
    %89 = vmatprep.subr.mxu0 0.0
    %90 = vmatpush1.msra.mxu0 %v67
    %91 = vmatprep.subr.mxu0 0.0
    %92 = vmatpush1.msra.mxu0 %v68
    %93 = vmatprep.subr.mxu0 0.0
    %94 = vmatpush1.msra.mxu0 0.0
    %95 = vmatprep.subr.mxu0 0.0
    %96 = vmatpush1.msra.mxu0 0.0
    %97 = vmatprep.subr.mxu0 0.0
    %98 = vmatpush1.msra.mxu0 0.0
    %99 = vmatprep.subr.mxu0 0.0
    %100 = vmatpush1.msra.mxu0 0.0
    %101 = vmatprep.subr.mxu0 0.0
    %102 = vmatpush1.msra.mxu0 0.0
    %103 = vmatprep.subr.mxu0 0.0
    %104 = vmatpush1.msra.mxu0 0.0
    %105 = vmatprep.subr.mxu0 0.0
    %106 = vmatpush1.msra.mxu0 0.0
    %107 = vmatprep.subr.mxu0 0.0
    %108 = vmatpush1.msra.mxu0 0.0
    %109 = vmatprep.subr.mxu0 0.0
    %110 = vmatpush1.msra.mxu0 0.0
    %111 = vmatprep.subr.mxu0 0.0
    %112 = vmatpush1.msra.mxu0 0.0
    %113 = vmatprep.subr.mxu0 0.0
    %114 = vmatpush1.msra.mxu0 0.0
    %115 = vmatprep.subr.mxu0 0.0
    %116 = vmatpush1.msra.mxu0 0.0
    %117 = vmatprep.subr.mxu0 0.0
    %118 = vmatpush1.msra.mxu0 0.0
    %119 = vmatprep.subr.mxu0 0.0
    %120 = vmatpush1.msra.mxu0 0.0
    %121 = vmatprep.subr.mxu0 0.0
    %122 = vmatpush1.msra.mxu0 0.0
    %123 = vmatprep.subr.mxu0 0.0
    %124 = vmatpush1.msra.mxu0 0.0
    %125 = vmatprep.subr.mxu0 0.0
    %126 = vmatpush1.msra.mxu0 0.0
    %127 = vmatprep.subr.mxu0 0.0
    %128 = vmatpush1.msra.mxu0 0.0
    %129 = vmatprep.subr.mxu0 0.0
    %130 = vmatpush1.msra.mxu0 0.0
    %131 = vmatprep.subr.mxu0 0.0
    %132 = vmatpush1.msra.mxu0 0.0
    %133 = vmatprep.subr.mxu0 0.0
    %134 = vmatpush1.msra.mxu0 0.0
    %135 = vmatprep.subr.mxu0 0.0
    %136 = vmatpush1.msra.mxu0 0.0
    %137 = vmatprep.subr.mxu0 0.0
    %138 = vmatpush1.msra.mxu0 0.0
    %139 = vmatprep.subr.mxu0 0.0
    %140 = vmatpush1.msra.mxu0 0.0
    %141 = vmatprep.subr.mxu0 0.0
    %142 = vmatpush1.msra.mxu0 0.0
    %143 = vmatprep.subr.mxu0 0.0
    %144 = vmatpush1.msra.mxu0 0.0
    %145 = vmatprep.subr.mxu0 0.0
    %146 = vmatpush1.msra.mxu0 0.0
    %147 = vmatprep.subr.mxu0 0.0
    %148 = vmatpush1.msra.mxu0 0.0
    %149 = vmatprep.subr.mxu0 0.0
    %150 = vmatpush1.msra.mxu0 0.0
    %151 = vmatprep.subr.mxu0 0.0
    %152 = vmatpush1.msra.mxu0 0.0
    %153 = vmatprep.mubr.f32.mxu0 0.0
    %154 = vmatmul.mubr.f32.gmra.mrb[0].mxu0 %v78
    %v155 = vpop.f32.mrb[0].mxu0
    %v156 = vadd.f32 %v74, %v155
    %v157 = vpop.f32.mrb[0].mxu0
    %158 = vmatprep.mubr.f32.mxu0 0.0
    %159 = vmatmul.mubr.f32.gmra.mrb[0].mxu0 %v81
    %v160 = vpop.f32.mrb[0].mxu0
    %v161 = vadd.f32 %v74, %v160
    %v162 = vpop.f32.mrb[0].mxu0
    %163 = vmatprep.mubr.f32.mxu0 0.0
    %164 = vmatmul.mubr.f32.gmra.mrb[0].mxu0 %v84
    %v165 = vpop.f32.mrb[0].mxu0
    %v166 = vadd.f32 %v74, %v165
    %v167 = vpop.f32.mrb[0].mxu0
    %168 = vmatprep.mubr.f32.mxu0 0.0
    %169 = vmatmul.mubr.f32.gmra.mrb[0].mxu0 %v87
    %v170 = vpop.f32.mrb[0].mxu0
    %v171 = vadd.f32 %v74, %v170
    %v172 = vpop.f32.mrb[0].mxu0
    %173 = vdwg.mxu0
    %v174 = vld [vmem:[%s4] sm:$0xff]
    %v175 = vld [vmem:[%s4 + $0x8] sm:$0xff]
    %v176 = vld [vmem:[%s4 + $0x10] sm:$0xff]
    %v177 = vld [vmem:[%s4 + $0x18] sm:$0xff]
    %v178 = vld [vmem:[%s5] sm:$0x1]
    %v179 = vld [vmem:[%s1] sm:$0xff]
    %vm180 = vcmask 261120
    %v182 = vsel %vm180, %v179, 0
    %184 = vmatprep.subr.mxu0 0.0
    %185 = vmatpush1.msra.mxu0 %v174
    %186 = vmatprep.subr.mxu0 0.0
    %187 = vmatpush1.msra.mxu0 %v175
    %188 = vmatprep.subr.mxu0 0.0
    %189 = vmatpush1.msra.mxu0 %v176
    %190 = vmatprep.subr.mxu0 0.0
    %191 = vmatpush1.msra.mxu0 %v177
    %192 = vmatprep.subr.mxu0 0.0
    %193 = vmatpush1.msra.mxu0 0.0
    %194 = vmatprep.subr.mxu0 0.0
    %195 = vmatpush1.msra.mxu0 0.0
    %196 = vmatprep.subr.mxu0 0.0
    %197 = vmatpush1.msra.mxu0 0.0
    %198 = vmatprep.subr.mxu0 0.0
    %199 = vmatpush1.msra.mxu0 0.0
    %200 = vmatprep.subr.mxu0 0.0
    %201 = vmatpush1.msra.mxu0 0.0
    %202 = vmatprep.subr.mxu0 0.0
    %203 = vmatpush1.msra.mxu0 0.0
    %204 = vmatprep.subr.mxu0 0.0
    %205 = vmatpush1.msra.mxu0 0.0
    %206 = vmatprep.subr.mxu0 0.0
    %207 = vmatpush1.msra.mxu0 0.0
    %208 = vmatprep.subr.mxu0 0.0
    %209 = vmatpush1.msra.mxu0 0.0
    %210 = vmatprep.subr.mxu0 0.0
    %211 = vmatpush1.msra.mxu0 0.0
    %212 = vmatprep.subr.mxu0 0.0
    %213 = vmatpush1.msra.mxu0 0.0
    %214 = vmatprep.subr.mxu0 0.0
    %215 = vmatpush1.msra.mxu0 0.0
    %216 = vmatprep.subr.mxu0 0.0
    %217 = vmatpush1.msra.mxu0 0.0
    %218 = vmatprep.subr.mxu0 0.0
    %219 = vmatpush1.msra.mxu0 0.0
    %220 = vmatprep.subr.mxu0 0.0
    %221 = vmatpush1.msra.mxu0 0.0
    %222 = vmatprep.subr.mxu0 0.0
    %223 = vmatpush1.msra.mxu0 0.0
    %224 = vmatprep.subr.mxu0 0.0
    %225 = vmatpush1.msra.mxu0 0.0
    %226 = vmatprep.subr.mxu0 0.0
    %227 = vmatpush1.msra.mxu0 0.0
    %228 = vmatprep.subr.mxu0 0.0
    %229 = vmatpush1.msra.mxu0 0.0
    %230 = vmatprep.subr.mxu0 0.0
    %231 = vmatpush1.msra.mxu0 0.0
    %232 = vmatprep.subr.mxu0 0.0
    %233 = vmatpush1.msra.mxu0 0.0
    %234 = vmatprep.subr.mxu0 0.0
    %235 = vmatpush1.msra.mxu0 0.0
    %236 = vmatprep.subr.mxu0 0.0
    %237 = vmatpush1.msra.mxu0 0.0
    %238 = vmatprep.subr.mxu0 0.0
    %239 = vmatpush1.msra.mxu0 0.0
    %240 = vmatprep.subr.mxu0 0.0
    %241 = vmatpush1.msra.mxu0 0.0
    %242 = vmatprep.subr.mxu0 0.0
    %243 = vmatpush1.msra.mxu0 0.0
    %244 = vmatprep.subr.mxu0 0.0
    %245 = vmatpush1.msra.mxu0 0.0
    %246 = vmatprep.subr.mxu0 0.0
    %247 = vmatpush1.msra.mxu0 0.0
    %248 = vmatprep.mubr.f32.mxu0 0.0
    %249 = vmatmul.mubr.f32.gmra.mrb[0].mxu0 %v182
    %v250 = vpop.f32.mrb[0].mxu0
    %v251 = vadd.f32 0.0, %v250
    %v252 = vpop.f32.mrb[0].mxu0
    %253 = vdwg.mxu0
    %v254 = vadd.f32 %v156, %v251
    %v255 = vxor.u32 %v254, 2147483648
    %v256 = vmul.f32 %v255, 1.442695
    %v257 = vpow.pop %v256
    %v258 = vadd.f32 %v257, 1.0
    %v259 = vrcp.pop %v258
    %v260 = vmul.f32 1.0, %v259
    %v262 = vlaneseq
    %v263 = vshrl.u32 %v262, 7
    %v264 = vsub.s32 0, %v263
    %v265 = vrot.slane %v178, %v264
    %266 = vrot.lane.b32.xlu0 %v265, 64
    %v267 = vpop.permute.xlu0 %266
    %v269 = vadd.f32 %v251, %v267
    %271 = vrot.lane.b32.xlu0 %v269, 64
    %v272 = vpop.permute.xlu0 %271
    %v274 = vmul.f32 %v260, %v272
    %276 = vrot.lane.b32.xlu0 %v274, 64
    %v277 = vpop.permute.xlu0 %276
    %v279 = vadd.f32 %v156, %v277
    %v280 = vtanh.pop %v279
    %v281 = vsub.f32 1.0, %v260
    %283 = vrot.lane.b32.xlu0 %v280, 96
    %v284 = vpop.permute.xlu0 %283
    %v286 = vmul.f32 %v281, %v284
    %287 = vrot.lane.b32.xlu0 %v179, 32
    %v288 = vpop.permute.xlu0 %287
    %v290 = vmul.f32 %v260, %v288
    %v291 = vadd.f32 %v286, %v290
    %293 = vrot.lane.b32.xlu0 %v291, 96
    %v294 = vpop.permute.xlu0 %293
    %v295 = vsel %vm180, %v294, 0
    %297 = vmatprep.subr.mxu0 0.0
    %298 = vmatpush1.msra.mxu0 %v174
    %299 = vmatprep.subr.mxu0 0.0
    %300 = vmatpush1.msra.mxu0 %v175
    %301 = vmatprep.subr.mxu0 0.0
    %302 = vmatpush1.msra.mxu0 %v176
    %303 = vmatprep.subr.mxu0 0.0
    %304 = vmatpush1.msra.mxu0 %v177
    %305 = vmatprep.subr.mxu0 0.0
    %306 = vmatpush1.msra.mxu0 0.0
    %307 = vmatprep.subr.mxu0 0.0
    %308 = vmatpush1.msra.mxu0 0.0
    %309 = vmatprep.subr.mxu0 0.0
    %310 = vmatpush1.msra.mxu0 0.0
    %311 = vmatprep.subr.mxu0 0.0
    %312 = vmatpush1.msra.mxu0 0.0
    %313 = vmatprep.subr.mxu0 0.0
    %314 = vmatpush1.msra.mxu0 0.0
    %315 = vmatprep.subr.mxu0 0.0
    %316 = vmatpush1.msra.mxu0 0.0
    %317 = vmatprep.subr.mxu0 0.0
    %318 = vmatpush1.msra.mxu0 0.0
    %319 = vmatprep.subr.mxu0 0.0
    %320 = vmatpush1.msra.mxu0 0.0
    %321 = vmatprep.subr.mxu0 0.0
    %322 = vmatpush1.msra.mxu0 0.0
    %323 = vmatprep.subr.mxu0 0.0
    %324 = vmatpush1.msra.mxu0 0.0
    %325 = vmatprep.subr.mxu0 0.0
    %326 = vmatpush1.msra.mxu0 0.0
    %327 = vmatprep.subr.mxu0 0.0
    %328 = vmatpush1.msra.mxu0 0.0
    %329 = vmatprep.subr.mxu0 0.0
    %330 = vmatpush1.msra.mxu0 0.0
    %331 = vmatprep.subr.mxu0 0.0
    %332 = vmatpush1.msra.mxu0 0.0
    %333 = vmatprep.subr.mxu0 0.0
    %334 = vmatpush1.msra.mxu0 0.0
    %335 = vmatprep.subr.mxu0 0.0
    %336 = vmatpush1.msra.mxu0 0.0
    %337 = vmatprep.subr.mxu0 0.0
    %338 = vmatpush1.msra.mxu0 0.0
    %339 = vmatprep.subr.mxu0 0.0
    %340 = vmatpush1.msra.mxu0 0.0
    %341 = vmatprep.subr.mxu0 0.0
    %342 = vmatpush1.msra.mxu0 0.0
    %343 = vmatprep.subr.mxu0 0.0
    %344 = vmatpush1.msra.mxu0 0.0
    %345 = vmatprep.subr.mxu0 0.0
    %346 = vmatpush1.msra.mxu0 0.0
    %347 = vmatprep.subr.mxu0 0.0
    %348 = vmatpush1.msra.mxu0 0.0
    %349 = vmatprep.subr.mxu0 0.0
    %350 = vmatpush1.msra.mxu0 0.0
    %351 = vmatprep.subr.mxu0 0.0
    %352 = vmatpush1.msra.mxu0 0.0
    %353 = vmatprep.subr.mxu0 0.0
    %354 = vmatpush1.msra.mxu0 0.0
    %355 = vmatprep.subr.mxu0 0.0
    %356 = vmatpush1.msra.mxu0 0.0
    %357 = vmatprep.subr.mxu0 0.0
    %358 = vmatpush1.msra.mxu0 0.0
    %359 = vmatprep.subr.mxu0 0.0
    %360 = vmatpush1.msra.mxu0 0.0
    %361 = vmatprep.mubr.f32.mxu0 0.0
    %362 = vmatmul.mubr.f32.gmra.mrb[0].mxu0 %v295
    %v363 = vpop.f32.mrb[0].mxu0
    %v364 = vadd.f32 0.0, %v363
    %v365 = vpop.f32.mrb[0].mxu0
    %366 = vdwg.mxu0
    %v367 = vadd.f32 %v161, %v364
    %v368 = vxor.u32 %v367, 2147483648
    %v369 = vmul.f32 %v368, 1.442695
    %v370 = vpow.pop %v369
    %v371 = vadd.f32 %v370, 1.0
    %v372 = vrcp.pop %v371
    %v373 = vmul.f32 1.0, %v372
    %v374 = vadd.f32 %v364, %v267
    %376 = vrot.lane.b32.xlu0 %v374, 64
    %v377 = vpop.permute.xlu0 %376
    %v379 = vmul.f32 %v373, %v377
    %381 = vrot.lane.b32.xlu0 %v379, 64
    %v382 = vpop.permute.xlu0 %381
    %v384 = vadd.f32 %v161, %v382
    %v385 = vtanh.pop %v384
    %v386 = vsub.f32 1.0, %v373
    %388 = vrot.lane.b32.xlu0 %v385, 96
    %v389 = vpop.permute.xlu0 %388
    %v391 = vmul.f32 %v386, %v389
    %v392 = vmul.f32 %v373, %v291
    %v393 = vadd.f32 %v391, %v392
    %395 = vrot.lane.b32.xlu0 %v393, 96
    %v396 = vpop.permute.xlu0 %395
    %v397 = vsel %vm180, %v396, 0
    %399 = vmatprep.subr.mxu0 0.0
    %400 = vmatpush1.msra.mxu0 %v174
    %401 = vmatprep.subr.mxu0 0.0
    %402 = vmatpush1.msra.mxu0 %v175
    %403 = vmatprep.subr.mxu0 0.0
    %404 = vmatpush1.msra.mxu0 %v176
    %405 = vmatprep.subr.mxu0 0.0
    %406 = vmatpush1.msra.mxu0 %v177
    %407 = vmatprep.subr.mxu0 0.0
    %408 = vmatpush1.msra.mxu0 0.0
    %409 = vmatprep.subr.mxu0 0.0
    %410 = vmatpush1.msra.mxu0 0.0
    %411 = vmatprep.subr.mxu0 0.0
    %412 = vmatpush1.msra.mxu0 0.0
    %413 = vmatprep.subr.mxu0 0.0
    %414 = vmatpush1.msra.mxu0 0.0
    %415 = vmatprep.subr.mxu0 0.0
    %416 = vmatpush1.msra.mxu0 0.0
    %417 = vmatprep.subr.mxu0 0.0
    %418 = vmatpush1.msra.mxu0 0.0
    %419 = vmatprep.subr.mxu0 0.0
    %420 = vmatpush1.msra.mxu0 0.0
    %421 = vmatprep.subr.mxu0 0.0
    %422 = vmatpush1.msra.mxu0 0.0
    %423 = vmatprep.subr.mxu0 0.0
    %424 = vmatpush1.msra.mxu0 0.0
    %425 = vmatprep.subr.mxu0 0.0
    %426 = vmatpush1.msra.mxu0 0.0
    %427 = vmatprep.subr.mxu0 0.0
    %428 = vmatpush1.msra.mxu0 0.0
    %429 = vmatprep.subr.mxu0 0.0
    %430 = vmatpush1.msra.mxu0 0.0
    %431 = vmatprep.subr.mxu0 0.0
    %432 = vmatpush1.msra.mxu0 0.0
    %433 = vmatprep.subr.mxu0 0.0
    %434 = vmatpush1.msra.mxu0 0.0
    %435 = vmatprep.subr.mxu0 0.0
    %436 = vmatpush1.msra.mxu0 0.0
    %437 = vmatprep.subr.mxu0 0.0
    %438 = vmatpush1.msra.mxu0 0.0
    %439 = vmatprep.subr.mxu0 0.0
    %440 = vmatpush1.msra.mxu0 0.0
    %441 = vmatprep.subr.mxu0 0.0
    %442 = vmatpush1.msra.mxu0 0.0
    %443 = vmatprep.subr.mxu0 0.0
    %444 = vmatpush1.msra.mxu0 0.0
    %445 = vmatprep.subr.mxu0 0.0
    %446 = vmatpush1.msra.mxu0 0.0
    %447 = vmatprep.subr.mxu0 0.0
    %448 = vmatpush1.msra.mxu0 0.0
    %449 = vmatprep.subr.mxu0 0.0
    %450 = vmatpush1.msra.mxu0 0.0
    %451 = vmatprep.subr.mxu0 0.0
    %452 = vmatpush1.msra.mxu0 0.0
    %453 = vmatprep.subr.mxu0 0.0
    %454 = vmatpush1.msra.mxu0 0.0
    %455 = vmatprep.subr.mxu0 0.0
    %456 = vmatpush1.msra.mxu0 0.0
    %457 = vmatprep.subr.mxu0 0.0
    %458 = vmatpush1.msra.mxu0 0.0
    %459 = vmatprep.subr.mxu0 0.0
    %460 = vmatpush1.msra.mxu0 0.0
    %461 = vmatprep.subr.mxu0 0.0
    %462 = vmatpush1.msra.mxu0 0.0
    %463 = vmatprep.mubr.f32.mxu0 0.0
    %464 = vmatmul.mubr.f32.gmra.mrb[0].mxu0 %v397
    %v465 = vpop.f32.mrb[0].mxu0
    %v466 = vadd.f32 0.0, %v465
    %v467 = vpop.f32.mrb[0].mxu0
    %468 = vdwg.mxu0
    %v469 = vadd.f32 %v166, %v466
    %v470 = vxor.u32 %v469, 2147483648
    %v471 = vmul.f32 %v470, 1.442695
    %v472 = vpow.pop %v471
    %v473 = vadd.f32 %v472, 1.0
    %v474 = vrcp.pop %v473
    %v475 = vmul.f32 1.0, %v474
    %v476 = vadd.f32 %v466, %v267
    %478 = vrot.lane.b32.xlu0 %v476, 64
    %v479 = vpop.permute.xlu0 %478
    %v481 = vmul.f32 %v475, %v479
    %483 = vrot.lane.b32.xlu0 %v481, 64
    %v484 = vpop.permute.xlu0 %483
    %v486 = vadd.f32 %v166, %v484
    %v487 = vtanh.pop %v486
    %v488 = vsub.f32 1.0, %v475
    %490 = vrot.lane.b32.xlu0 %v487, 96
    %v491 = vpop.permute.xlu0 %490
    %v493 = vmul.f32 %v488, %v491
    %v494 = vmul.f32 %v475, %v393
    %v495 = vadd.f32 %v493, %v494
    %497 = vrot.lane.b32.xlu0 %v495, 96
    %v498 = vpop.permute.xlu0 %497
    %v499 = vsel %vm180, %v498, 0
    %501 = vmatprep.subr.mxu0 0.0
    %502 = vmatpush1.msra.mxu0 %v174
    %503 = vmatprep.subr.mxu0 0.0
    %504 = vmatpush1.msra.mxu0 %v175
    %505 = vmatprep.subr.mxu0 0.0
    %506 = vmatpush1.msra.mxu0 %v176
    %507 = vmatprep.subr.mxu0 0.0
    %508 = vmatpush1.msra.mxu0 %v177
    %509 = vmatprep.subr.mxu0 0.0
    %510 = vmatpush1.msra.mxu0 0.0
    %511 = vmatprep.subr.mxu0 0.0
    %512 = vmatpush1.msra.mxu0 0.0
    %513 = vmatprep.subr.mxu0 0.0
    %514 = vmatpush1.msra.mxu0 0.0
    %515 = vmatprep.subr.mxu0 0.0
    %516 = vmatpush1.msra.mxu0 0.0
    %517 = vmatprep.subr.mxu0 0.0
    %518 = vmatpush1.msra.mxu0 0.0
    %519 = vmatprep.subr.mxu0 0.0
    %520 = vmatpush1.msra.mxu0 0.0
    %521 = vmatprep.subr.mxu0 0.0
    %522 = vmatpush1.msra.mxu0 0.0
    %523 = vmatprep.subr.mxu0 0.0
    %524 = vmatpush1.msra.mxu0 0.0
    %525 = vmatprep.subr.mxu0 0.0
    %526 = vmatpush1.msra.mxu0 0.0
    %527 = vmatprep.subr.mxu0 0.0
    %528 = vmatpush1.msra.mxu0 0.0
    %529 = vmatprep.subr.mxu0 0.0
    %530 = vmatpush1.msra.mxu0 0.0
    %531 = vmatprep.subr.mxu0 0.0
    %532 = vmatpush1.msra.mxu0 0.0
    %533 = vmatprep.subr.mxu0 0.0
    %534 = vmatpush1.msra.mxu0 0.0
    %535 = vmatprep.subr.mxu0 0.0
    %536 = vmatpush1.msra.mxu0 0.0
    %537 = vmatprep.subr.mxu0 0.0
    %538 = vmatpush1.msra.mxu0 0.0
    %539 = vmatprep.subr.mxu0 0.0
    %540 = vmatpush1.msra.mxu0 0.0
    %541 = vmatprep.subr.mxu0 0.0
    %542 = vmatpush1.msra.mxu0 0.0
    %543 = vmatprep.subr.mxu0 0.0
    %544 = vmatpush1.msra.mxu0 0.0
    %545 = vmatprep.subr.mxu0 0.0
    %546 = vmatpush1.msra.mxu0 0.0
    %547 = vmatprep.subr.mxu0 0.0
    %548 = vmatpush1.msra.mxu0 0.0
    %549 = vmatprep.subr.mxu0 0.0
    %550 = vmatpush1.msra.mxu0 0.0
    %551 = vmatprep.subr.mxu0 0.0
    %552 = vmatpush1.msra.mxu0 0.0
    %553 = vmatprep.subr.mxu0 0.0
    %554 = vmatpush1.msra.mxu0 0.0
    %555 = vmatprep.subr.mxu0 0.0
    %556 = vmatpush1.msra.mxu0 0.0
    %557 = vmatprep.subr.mxu0 0.0
    %558 = vmatpush1.msra.mxu0 0.0
    %559 = vmatprep.subr.mxu0 0.0
    %560 = vmatpush1.msra.mxu0 0.0
    %561 = vmatprep.subr.mxu0 0.0
    %562 = vmatpush1.msra.mxu0 0.0
    %563 = vmatprep.subr.mxu0 0.0
    %564 = vmatpush1.msra.mxu0 0.0
    %565 = vmatprep.mubr.f32.mxu0 0.0
    %566 = vmatmul.mubr.f32.gmra.mrb[0].mxu0 %v499
    %v567 = vpop.f32.mrb[0].mxu0
    %v568 = vadd.f32 0.0, %v567
    %v569 = vpop.f32.mrb[0].mxu0
    %570 = vdwg.mxu0
    %v571 = vadd.f32 %v171, %v568
    %v572 = vxor.u32 %v571, 2147483648
    %v573 = vmul.f32 %v572, 1.442695
    %v574 = vpow.pop %v573
    %v575 = vadd.f32 %v574, 1.0
    %v576 = vrcp.pop %v575
    %v577 = vmul.f32 1.0, %v576
    %v578 = vadd.f32 %v568, %v267
    %580 = vrot.lane.b32.xlu0 %v578, 64
    %v581 = vpop.permute.xlu0 %580
    %v583 = vmul.f32 %v577, %v581
    %585 = vrot.lane.b32.xlu0 %v583, 64
    %v586 = vpop.permute.xlu0 %585
    %v588 = vadd.f32 %v171, %v586
    %v589 = vtanh.pop %v588
    %v590 = vsub.f32 1.0, %v577
    %592 = vrot.lane.b32.xlu0 %v589, 96
    %v593 = vpop.permute.xlu0 %592
    %v595 = vmul.f32 %v590, %v593
    %v596 = vmul.f32 %v577, %v495
    %v597 = vadd.f32 %v595, %v596
    %599 = vrot.lane.b32.xlu0 %v597, 96
    %v600 = vpop.permute.xlu0 %599
    %602 = vst.msk [vmem:[%s8] sm:$0xff] %vm180, %v600
    %v603 = vld [vmem:[%s6] sm:$0xff]
    %v604 = vld [vmem:[%s6 + $0x8] sm:$0xff]
    %v605 = vld [vmem:[%s6 + $0x10] sm:$0xff]
    %v606 = vld [vmem:[%s6 + $0x18] sm:$0xff]
    %v607 = vld [vmem:[%s7] sm:$0x1]
    %v609 = vlaneseq
    %v610 = vshrl.u32 %v609, 7
    %v611 = vsub.s32 0, %v610
    %v612 = vrot.slane %v607, %v611
    %614 = vmatprep.subr.mxu0 0.0
    %615 = vmatpush1.msra.mxu0 %v603
    %616 = vmatprep.subr.mxu0 0.0
    %617 = vmatpush1.msra.mxu0 %v604
    %618 = vmatprep.subr.mxu0 0.0
    %619 = vmatpush1.msra.mxu0 %v605
    %620 = vmatprep.subr.mxu0 0.0
    %621 = vmatpush1.msra.mxu0 %v606
    %622 = vmatprep.subr.mxu0 0.0
    %623 = vmatpush1.msra.mxu0 0.0
    %624 = vmatprep.subr.mxu0 0.0
    %625 = vmatpush1.msra.mxu0 0.0
    %626 = vmatprep.subr.mxu0 0.0
    %627 = vmatpush1.msra.mxu0 0.0
    %628 = vmatprep.subr.mxu0 0.0
    %629 = vmatpush1.msra.mxu0 0.0
    %630 = vmatprep.subr.mxu0 0.0
    %631 = vmatpush1.msra.mxu0 0.0
    %632 = vmatprep.subr.mxu0 0.0
    %633 = vmatpush1.msra.mxu0 0.0
    %634 = vmatprep.subr.mxu0 0.0
    %635 = vmatpush1.msra.mxu0 0.0
    %636 = vmatprep.subr.mxu0 0.0
    %637 = vmatpush1.msra.mxu0 0.0
    %638 = vmatprep.subr.mxu0 0.0
    %639 = vmatpush1.msra.mxu0 0.0
    %640 = vmatprep.subr.mxu0 0.0
    %641 = vmatpush1.msra.mxu0 0.0
    %642 = vmatprep.subr.mxu0 0.0
    %643 = vmatpush1.msra.mxu0 0.0
    %644 = vmatprep.subr.mxu0 0.0
    %645 = vmatpush1.msra.mxu0 0.0
    %646 = vmatprep.subr.mxu0 0.0
    %647 = vmatpush1.msra.mxu0 0.0
    %648 = vmatprep.subr.mxu0 0.0
    %649 = vmatpush1.msra.mxu0 0.0
    %650 = vmatprep.subr.mxu0 0.0
    %651 = vmatpush1.msra.mxu0 0.0
    %652 = vmatprep.subr.mxu0 0.0
    %653 = vmatpush1.msra.mxu0 0.0
    %654 = vmatprep.subr.mxu0 0.0
    %655 = vmatpush1.msra.mxu0 0.0
    %656 = vmatprep.subr.mxu0 0.0
    %657 = vmatpush1.msra.mxu0 0.0
    %658 = vmatprep.subr.mxu0 0.0
    %659 = vmatpush1.msra.mxu0 0.0
    %660 = vmatprep.subr.mxu0 0.0
    %661 = vmatpush1.msra.mxu0 0.0
    %662 = vmatprep.subr.mxu0 0.0
    %663 = vmatpush1.msra.mxu0 0.0
    %664 = vmatprep.subr.mxu0 0.0
    %665 = vmatpush1.msra.mxu0 0.0
    %666 = vmatprep.subr.mxu0 0.0
    %667 = vmatpush1.msra.mxu0 0.0
    %668 = vmatprep.subr.mxu0 0.0
    %669 = vmatpush1.msra.mxu0 0.0
    %670 = vmatprep.subr.mxu0 0.0
    %671 = vmatpush1.msra.mxu0 0.0
    %672 = vmatprep.subr.mxu0 0.0
    %673 = vmatpush1.msra.mxu0 0.0
    %674 = vmatprep.subr.mxu0 0.0
    %675 = vmatpush1.msra.mxu0 0.0
    %676 = vmatprep.subr.mxu0 0.0
    %677 = vmatpush1.msra.mxu0 0.0
    %678 = vmatprep.mubr.f32.mxu0 0.0
    %679 = vmatmul.mubr.f32.gmra.mrb[0].mxu0 %v295
    %v680 = vpop.f32.mrb[0].mxu0
    %v681 = vadd.f32 %v612, %v680
    %v682 = vpop.f32.mrb[0].mxu0
    %683 = vdwg.mxu0
    %v684 = vlaneseq
    %v685 = vshrl.u32 %v684, 7
    %v686 = vlaneseq
    %v687 = vand.u32 %v686, 127
    %vm688 = vcmp.lt.s32.totalorder %v687, 20
    %v689 = vsel %vm688, %v681, -inf
    %690 = vmax.xlane.f32.xlu0 %v689
    %v691 = vpop.xlane.xlu0 %690
    %v692 = vsub.f32 %v689, %v691
    %v693 = vmul.f32 %v692, 1.442695
    %v694 = vpow.pop %v693
    %695 = vadd.xlane.f32.xlu0 %v694
    %v696 = vpop.xlane.xlu0 %695
    %v697 = vlog2.pop %v696
    %v698 = vmul.f32 %v697, 0.6931472
    %v699 = vsub.f32 %v692, %v698
    %700 = vst [vmem:[%s9] sm:$0xff] %v699
    %vm701 = vcmp.lt.s32.totalorder %v685, 2
    %vm702 = vmand %vm701, %vm688
    %v703 = vmul.u32 %v685, 20
    %v704 = vadd.s32 %v703, %v687
    %v705 = vcvt.s32.f32 %v704
    %v706 = vsel %vm702, %v699, -inf
    %707 = vmax.xlane.f32.xlu0 %v706
    %v708 = vpop.xlane.xlu0 %707
    %v709 = vrot.slane %v708, 4
    %v710 = vmax.f32 %v708, %v709
    %v711 = vrot.slane %v710, 2
    %v712 = vmax.f32 %v710, %v711
    %v713 = vrot.slane %v712, 1
    %v714 = vmax.f32 %v712, %v713
    %s715 = vtos %v714
    %v716 = vstv %s715
    %vm717 = vcmp.eq.f32.partialorder %v706, %v716
    %vm718 = vmand %vm717, %vm702
    %v719 = vsel %vm718, %v705, inf
    %720 = vmin.xlane.f32.xlu0 %v719
    %v721 = vpop.xlane.xlu0 %720
    %v722 = vrot.slane %v721, 4
    %v723 = vmin.f32 %v721, %v722
    %v724 = vrot.slane %v723, 2
    %v725 = vmin.f32 %v723, %v724
    %v726 = vrot.slane %v725, 1
    %v727 = vmin.f32 %v725, %v726
    %s728 = vtos %v727
    %v729 = vstv %s728
    %v730 = vcvt.f32.s32.to.zero.pseudo %v729
    %vm731 = vcmask 0
    %732 = vst.msk [vmem:[#allocation7] sm:$0x1] %vm731, %v730
    // Predicated region
    $region42: #{forward.1} parent=1 // pred_check
      _
    $region43: #{forward.1} parent=1 // pred_check_branch
      %734 = sbr.rel (0) target = $region45
    $region44: #{forward.1} parent=1 // pred_region
      _
    $region45: #{forward.1} parent=1 // pred_fallthru
      _
    // Predicated region
    $region46: #{forward.1} parent=1 // pred_check
      _
    $region47: #{forward.1} parent=1 // pred_check_branch
      %736 = sbr.rel (0) target = $region49
    $region48: #{forward.1} parent=1 // pred_region
      _
    $region49: #{forward.1} parent=1 // pred_fallthru
      _
    // Predicated region
    $region50: #{forward.1} parent=1 // pred_check
      _
    $region51: #{forward.1} parent=1 // pred_check_branch
      %738 = sbr.rel (0) target = $region53
    $region52: #{forward.1} parent=1 // pred_region
      %s740 = ssub.s32 16, 16
      %741 = vsyncadd [#allocation4], %s740
      %s743 = sshll.u32 [#allocation7], 4
      %s744 = int_to_ptr.vmem [resolvable:$true] %s743
      %746 = dma.vmem_to_hbm [thread:$0]  %s744, 16, %s10, [#allocation4]
    $region53: #{forward.1} parent=1 // pred_fallthru
      _
    // Predicated region
    $region54: #{forward.1} parent=1 // pred_check
      _
    $region55: #{forward.1} parent=1 // pred_check_branch
      %748 = sbr.rel (0) target = $region57
    $region56: #{forward.1} parent=1 // pred_region
      _
    $region57: #{forward.1} parent=1 // pred_fallthru
      _
    // Predicated region
    $region58: #{forward.1} parent=1 // pred_check
      _
    $region59: #{forward.1} parent=1 // pred_check_branch
      %750 = sbr.rel (0) target = $region61
    $region60: #{forward.1} parent=1 // pred_region
      _
    $region61: #{forward.1} parent=1 // pred_fallthru
      _
    // Predicated region
    $region62: #{forward.1} parent=1 // pred_check
      _
    $region63: #{forward.1} parent=1 // pred_check_branch
      %752 = sbr.rel (0) target = $region65
    $region64: #{forward.1} parent=1 // pred_region
      %753 = dma.done [#allocation4], 16
    $region65: #{forward.1} parent=1 // pred_fallthru
      _
    %754 = vsyncpa [#allocation3], 1
    %755 = vsyncpa [#allocation6], 1
    %756 = vsyncpa [#allocation4], 1

</llo_original>
